<compile_context>
chip_gen: v7x
topology: tpu7x:2x2x1
jax: 0.10.0
libtpu: 0.0.40
codegen_flags: <defaults>
</compile_context>

<pallas_src>
import functools

import jax
import jax.numpy as jnp
from jax.experimental import pallas as pl
from jax.experimental.pallas import tpu as pltpu

_LANE = 128


def _roundup(a, m):
    return (a + m - 1) // m * m


def _vmem_budget():
    """(vmem_limit_bytes, usable_bytes_for_blocks), gated on chip generation."""
    try:
        phys = int(pltpu.get_tpu_info().vmem_capacity_bytes)
    except Exception:
        phys = 0  # unknown -> be conservative (v7x-sized assumption)
    if phys >= (100 << 20):          # v5e / v6e: 128 MiB physical VMEM
        limit = 64 << 20
    else:                            # v7x-class: 64 MiB physical VMEM
        limit = 46 << 20
    # Leave headroom for Mosaic internal scratch / semaphores.
    return limit, limit - (4 << 20)


def _working_set_bytes(tb, C, s_tile, isx, isd):
    """Conservative per-step VMEM footprint: 2x double-buffered input windows
    plus the in-flight f32 temporaries (upcast logits / exp / product),
    including sublane padding of the second-to-last block dim."""
    s_pad = max(8, _roundup(s_tile, 8))
    x_blk = tb * C * s_pad * _LANE * isx
    d_blk = tb * (C - 1) * s_pad * _LANE * isd
    x_f32 = tb * C * s_pad * _LANE * 4
    d_f32 = tb * (C - 1) * s_pad * _LANE * 4
    temps = max(2 * x_f32, x_f32 + 2 * d_f32)
    return 2 * (x_blk + d_blk) + temps + (1 << 17)


def _plan(N, C, HW, isx, isd, usable):
    """Pick (padded_HW, S, batch_tile, spatial_tile)."""
    def fits(tb, s_tile):
        return _working_set_bytes(tb, C, s_tile, isx, isd) <= usable

    s128 = _roundup(HW, _LANE) // _LANE
    if fits(1, s128):
        # Small-image regime: full spatial extent per block, tile the batch so
        # each step still moves a large block (amortizes ~0.35us/step).
        tb = 1
        for cand in range(N, 0, -1):
            if N % cand == 0 and fits(cand, s128):
                tb = cand
                break
        if N >= 2 and N // tb < 2:
            # Keep >= 2 batch blocks so both TensorCores on v7x get work
            # (harmless on single-core v5e/v6e).
            tb = max(d for d in range(1, N // 2 + 1) if N % d == 0)
        return s128 * _LANE, s128, tb, s128

    # Large-image regime: spatial tiling.  Pad HW to a multiple of 8*128 so S
    # is a multiple of 8 (dense (8,128) tiles) and a multiple-of-8 tile that
    # divides S always exists (zero padding is masked by zero dist values).
    S = _roundup(HW, 8 * _LANE) // _LANE
    s_tile = S
    while s_tile > 8 and (S % s_tile != 0 or not fits(1, s_tile)):
        s_tile -= 8
    s_tile = max(s_tile, 8)
    return S * _LANE, S, 1, s_tile


def _softmax_tail_times_dist(x_ref, d_ref):
    """softmax(x, axis=1)[:, 1:] * dist in f32 on (tb, C, s_tile, 128) blocks.

    The channel axis is a leading (non-minor) axis, so max/sum over it are
    cheap cross-vreg VPU ops; the denominator reciprocal uses the EUP slot."""
    x = x_ref[...].astype(jnp.float32)                     # (tb, C, s, 128)
    m = jnp.max(x, axis=1, keepdims=True)
    e = jnp.exp(x - m)
    # approx=True -> EUP vrcp (essentially free); ~1e-3-level relative error.
    inv = pl.reciprocal(jnp.sum(e, axis=1, keepdims=True), approx=True)
    return e[:, 1:] * inv * d_ref[...].astype(jnp.float32)  # (tb, C-1, s, 128)


def _mean_kernel(x_ref, d_ref, o_ref):
    """grid = (batch_blocks, spatial_blocks), both parallel.

    Each step reduces its product to a single scalar partial (no block-sized
    VMEM accumulator, no cross-step dependency), so both grid axes can be
    sharded across TensorCores; the tiny (nb, st) partial array is reduced in
    the wrapper."""
    prod = _softmax_tail_times_dist(x_ref, d_ref)
    o_ref[...] = jnp.zeros_like(o_ref) + jnp.sum(prod)


def _none_kernel(x_ref, d_ref, o_ref, acc_ref, *, inv_hw):
    """grid = (batch_blocks, spatial_blocks); spatial axis is the reduction.

    The per-step product is reduced to a (tb, C-1) partial and accumulated in
    a tiny VMEM scratch; the narrow (C-1)-lane output block is written only
    once per batch block, on the last spatial step."""
    s = pl.program_id(1)

    @pl.when(s == 0)
    def _():
        acc_ref[...] = jnp.zeros_like(acc_ref)

    prod = _softmax_tail_times_dist(x_ref, d_ref)          # (tb, C-1, s, 128)
    acc_ref[...] += jnp.sum(prod, axis=(2, 3))[None]       # (1, tb, C-1)

    @pl.when(s == pl.num_programs(1) - 1)
    def _():
        o_ref[...] = acc_ref[...] * inv_hw


def boundary_loss(x, dist_maps, reduction="mean"):
    assert reduction in ("none", "mean")
    assert x.ndim == 4, "Expected input of shape: (N, C, H, W)"
    assert dist_maps.ndim == 4, "Expected distance maps of shape: (N, C-1, H, W)"
    N, C, H, W = x.shape
    assert C >= 2
    assert dist_maps.shape == (N, C - 1, H, W)
    HW = H * W

    vmem_limit, usable = _vmem_budget()
    isx = jnp.dtype(x.dtype).itemsize
    isd = jnp.dtype(dist_maps.dtype).itemsize
    HWp, S, tb, s_tile = _plan(N, C, HW, isx, isd, usable)
    nb, st = N // tb, S // s_tile

    # Glue: flatten spatial dims onto the minor (sublane, lane) axes.  Any
    # zero-padded spatial tail is harmless: dist is zero there, so padded
    # columns contribute exactly 0 to every sum (mean uses the true HW).
    # Inputs keep their dtype (bf16 inputs halve HBM traffic); the PyTorch
    # type_as() cast is subsumed by the in-kernel f32 upcast.
    xf = x.reshape(N, C, HW)
    df = dist_maps.reshape(N, C - 1, HW)
    if HWp != HW:
        pad = ((0, 0), (0, 0), (0, HWp - HW))
        xf = jnp.pad(xf, pad)
        df = jnp.pad(df, pad)
    xf = xf.reshape(N, C, S, _LANE)
    df = df.reshape(N, C - 1, S, _LANE)

    in_specs = [
        pl.BlockSpec((tb, C, s_tile, _LANE), lambda b, s: (b, 0, s, 0)),
        pl.BlockSpec((tb, C - 1, s_tile, _LANE), lambda b, s: (b, 0, s, 0)),
    ]

    if reduction == "mean":
        partials = pl.pallas_call(
            _mean_kernel,
            out_shape=jax.ShapeDtypeStruct((nb, st, 1, _LANE), jnp.float32),
            grid_spec=pltpu.PrefetchScalarGridSpec(
                num_scalar_prefetch=0,
                grid=(nb, st),
                in_specs=in_specs,
                out_specs=pl.BlockSpec((1, 1, 1, _LANE), lambda b, s: (b, s, 0, 0)),
            ),
            compiler_params=pltpu.CompilerParams(
                dimension_semantics=("parallel", "parallel"),
                vmem_limit_bytes=vmem_limit,
            ),
        )(xf, df)
        # Tiny cross-block reduction + normalization (true element count).
        return jnp.sum(partials[:, :, 0, 0]) * (1.0 / (N * (C - 1) * HW))

    # reduction == 'none'
    out = pl.pallas_call(
        functools.partial(_none_kernel, inv_hw=1.0 / HW),
        out_shape=jax.ShapeDtypeStruct((nb, tb, C - 1), jnp.float32),
        grid_spec=pltpu.PrefetchScalarGridSpec(
            num_scalar_prefetch=0,
            grid=(nb, st),
            in_specs=in_specs,
            out_specs=pl.BlockSpec((1, tb, C - 1), lambda b, s: (b, 0, 0)),
            scratch_shapes=[pltpu.VMEM((1, tb, C - 1), jnp.float32)],
        ),
        compiler_params=pltpu.CompilerParams(
            dimension_semantics=("parallel", "arbitrary"),
            vmem_limit_bytes=vmem_limit,
        ),
    )(xf, df)
    return out.reshape(N, C - 1)


if __name__ == "__main__":
    key = jax.random.PRNGKey(0)
    k1, k2 = jax.random.split(key)
    N, C, H, W = 2, 4, 16, 16

    # Module takes logits `input` (N, C, H, W) and `dist_maps` (N, C-1, H, W).
    x = jax.random.normal(k1, (N, C, H, W), dtype=jnp.float32)
    dist_maps = jax.random.normal(k2, (N, C - 1, H, W), dtype=jnp.float32)

    loss_mean = boundary_loss(x, dist_maps, reduction="mean")
    loss_none = boundary_loss(x, dist_maps, reduction="none")
    jax.block_until_ready((loss_mean, loss_none))

    # Pure-JAX reference check of both reduction modes (tolerance accounts for
    # the approximate EUP reciprocal in the softmax denominator).
    sm = jax.nn.softmax(x, axis=1)
    ref = sm[:, 1:, :, :] * dist_maps
    assert jnp.allclose(loss_mean, ref.mean(), atol=1e-3, rtol=1e-3)
    assert jnp.allclose(loss_none, ref.mean(axis=(2, 3)), atol=1e-3, rtol=1e-3)

    print("KERNEL_OK")
</pallas_src>

<mosaic_0001>
module attributes {stable_mosaic.version = 11 : i64} {
  func.func @_mean_kernel(%arg0: i32, %arg1: i32, %arg2: memref<1x4x2x128xf32, #tpu.memory_space<vmem>>, %arg3: memref<1x3x2x128xf32, #tpu.memory_space<vmem>>, %arg4: memref<1x1x1x128xf32, #tpu.memory_space<vmem>>) attributes {dimension_semantics = [#tpu.dimension_semantics<parallel>, #tpu.dimension_semantics<parallel>], iteration_bounds = array<i64: 2, 1>, scalar_prefetch = 0 : i64, scratch_operands = 0 : i64, tpu.core_type = #tpu.core_type<tc>, window_params = [{transform_indices = @transform_0, window_bounds = array<i64: 1, 4, 2, 128>}, {transform_indices = @transform_1, window_bounds = array<i64: 1, 3, 2, 128>}, {transform_indices = @transform_2, window_bounds = array<i64: 1, 1, 1, 128>}]} {
    %c0 = arith.constant 0 : index
    %c0_0 = arith.constant 0 : index
    %c0_1 = arith.constant 0 : index
    %c0_2 = arith.constant 0 : index
    %0 = vector.load %arg2[%c0, %c0_0, %c0_1, %c0_2] : memref<1x4x2x128xf32, #tpu.memory_space<vmem>>, vector<1x4x2x128xf32>
    %cst = arith.constant dense<0xFF800000> : vector<1x2x128xf32>
    %1 = vector.multi_reduction <maximumf>, %0, %cst [1] : vector<1x4x2x128xf32> to vector<1x2x128xf32>
    %2 = vector.shape_cast %1 : vector<1x2x128xf32> to vector<1x1x2x128xf32>
    %3 = vector.broadcast %2 : vector<1x1x2x128xf32> to vector<1x4x2x128xf32>
    %4 = arith.subf %0, %3 : vector<1x4x2x128xf32>
    %5 = math.exp %4 : vector<1x4x2x128xf32>
    %cst_3 = arith.constant dense<0.000000e+00> : vector<1x2x128xf32>
    %6 = vector.multi_reduction <add>, %5, %cst_3 [1] : vector<1x4x2x128xf32> to vector<1x2x128xf32>
    %7 = vector.shape_cast %6 : vector<1x2x128xf32> to vector<1x1x2x128xf32>
    %8 = tpu.reciprocal %7 {approx = true} : vector<1x1x2x128xf32> -> vector<1x1x2x128xf32>
    %9 = vector.extract_strided_slice %5 {offsets = [0, 1, 0, 0], sizes = [1, 3, 2, 128], strides = [1, 1, 1, 1]} : vector<1x4x2x128xf32> to vector<1x3x2x128xf32>
    %10 = vector.broadcast %8 : vector<1x1x2x128xf32> to vector<1x3x2x128xf32>
    %11 = arith.mulf %9, %10 : vector<1x3x2x128xf32>
    %c0_4 = arith.constant 0 : index
    %c0_5 = arith.constant 0 : index
    %c0_6 = arith.constant 0 : index
    %c0_7 = arith.constant 0 : index
    %12 = vector.load %arg3[%c0_4, %c0_5, %c0_6, %c0_7] : memref<1x3x2x128xf32, #tpu.memory_space<vmem>>, vector<1x3x2x128xf32>
    %13 = arith.mulf %11, %12 : vector<1x3x2x128xf32>
    %cst_8 = arith.constant 0.000000e+00 : f32
    %14 = vector.broadcast %cst_8 : f32 to vector<1x1x1x128xf32>
    %15 = vector.shape_cast %13 : vector<1x3x2x128xf32> to vector<1x1x3x2x128xf32>
    %cst_9 = arith.constant dense<0.000000e+00> : vector<1xf32>
    %16 = vector.multi_reduction <add>, %15, %cst_9 [1, 2, 3, 4] : vector<1x1x3x2x128xf32> to vector<1xf32>
    %17 = vector.shape_cast %16 : vector<1xf32> to vector<1x1x1x1x1xf32>
    %18 = vector.extract %17[0, 0, 0, 0, 0] : f32 from vector<1x1x1x1x1xf32>
    %19 = vector.broadcast %18 : f32 to vector<1x1x1x128xf32>
    %20 = arith.addf %14, %19 : vector<1x1x1x128xf32>
    %c0_10 = arith.constant 0 : index
    %c0_11 = arith.constant 0 : index
    %c0_12 = arith.constant 0 : index
    %c0_13 = arith.constant 0 : index
    %21 = vector.load %arg4[%c0_10, %c0_11, %c0_12, %c0_13] : memref<1x1x1x128xf32, #tpu.memory_space<vmem>>, vector<1x1x1x128xf32>
    tpu.vector_store %arg4[%c0_10, %c0_11, %c0_12, %c0_13], %20 {strides = array<i32>} : memref<1x1x1x128xf32, #tpu.memory_space<vmem>>, vector<1x1x1x128xf32>,
    return
  }
  func.func @transform_0(%arg0: i32, %arg1: i32) -> (i32, i32, i32, i32) {
    %c0_i32 = arith.constant 0 : i32
    %c0_i32_0 = arith.constant 0 : i32
    %c0_i32_1 = arith.constant 0 : i32
    return %arg0, %c0_i32, %arg1, %c0_i32_0 : i32, i32, i32, i32
  }
  func.func @transform_1(%arg0: i32, %arg1: i32) -> (i32, i32, i32, i32) {
    %c0_i32 = arith.constant 0 : i32
    %c0_i32_0 = arith.constant 0 : i32
    %c0_i32_1 = arith.constant 0 : i32
    return %arg0, %c0_i32, %arg1, %c0_i32_0 : i32, i32, i32, i32
  }
  func.func @transform_2(%arg0: i32, %arg1: i32) -> (i32, i32, i32, i32) {
    %c0_i32 = arith.constant 0 : i32
    %c0_i32_0 = arith.constant 0 : i32
    %c0_i32_1 = arith.constant 0 : i32
    return %arg0, %arg1, %c0_i32, %c0_i32_0 : i32, i32, i32, i32
  }
}

</mosaic_0001>

<llo_original>
// kernel: tpu_custom_call.1
$region0: #{tpu_custom_call.1}
  #allocation0 [shape = 'u32[]', space=smem, size = 0x4, offset = 0x4, fixed_abs, tag = 'smem constant byte address 0x4 - core index']
  #allocation1 [shape = 'u32[144,128]{1,0:T(1,128)}', space=vmem, size = 0x12000, scoped, tag = 'internal scratch']
  %s0 = inlined_call_operand.hbm [shape: f32[2,4,2,128], index: 0, kind: input, shape index: {}]
  %s1 = inlined_call_operand.hbm [shape: f32[2,3,2,128], index: 1, kind: input, shape index: {}]
  %s2 = inlined_call_operand.hbm [shape: f32[2,1,1,128], index: 2, kind: output, shape index: {}]
  %s3 = sld [smem:[#allocation0]]
  $region49: #{tpu_custom_call.1} parent=0
    _
  %s5 = ssub.s32 1, %s3
  %s6 = scalar_select 0, %s5, %s3
  $region1: #{tpu_custom_call.1} parent=0
    #allocation2 [shape = 'u8[8192]{0}', space=vmem, size = 0x2000, scoped, tag = 'input window, operand 0']
    #allocation3 [shape = 's32[2]{0}', space=sflag, size = 0x8, scoped, tag = 'scoped memory for tpu_custom_call.1']
    #allocation4 [shape = 's32[2]{0}', space=sflag, size = 0x8, scoped, tag = 'scoped memory for tpu_custom_call.1']
    #allocation5 [shape = 'u8[6144]{0}', space=vmem, size = 0x1800, scoped, tag = 'input window, operand 1']
    #allocation6 [shape = 's32[2]{0}', space=sflag, size = 0x8, scoped, tag = 'scoped memory for tpu_custom_call.1']
    #allocation7 [shape = 'u8[1024]{0}', space=vmem, size = 0x400, scoped, tag = 'output window, operand 0']
    %7 = vsyncpa [#allocation3], 0
    %s8 = scalar_lea.sflag [#allocation3], 1
    %9 = vsyncpa %s8, 0
    %10 = vsyncpa [#allocation6], 0
    %s11 = scalar_lea.sflag [#allocation6], 1
    %12 = vsyncpa %s11, 0
    %13 = vsyncpa [#allocation4], 0
    %s14 = scalar_lea.sflag [#allocation4], 1
    %15 = vsyncpa %s14, 0
    loop: start=0, step=1, limit=4
    $region2: #{tpu_custom_call.1} parent=1 // loop_pre_header
      _
    $region3: #{tpu_custom_call.1} parent=1 // loop_header
      %s17 = sphi 0, %s21
      %p18 = scmp.ge.s32.totalorder %s17, 4
      %s24 = sphi 0, %s36
      %s25 = sphi 0, %s32
      %s26 = sphi 0, %s24
      %s27 = sphi 0, %s25
      %s28 = sphi 0, %s26
      %s29 = sphi 0, %s27
      %s41 = sphi 0, %s43
      %s44 = sphi 0, %s41
      %s45 = sphi 0, %s44
      %s61 = sphi 0, %s45
      %s69 = sphi 0, %s71
      %s72 = sphi 0, %s69
      %s73 = sphi 0, %s72
      %s89 = sphi 0, %s73
      %s97 = sphi 0, %s99
      %s100 = sphi 0, %s97
      %s101 = sphi 0, %s100
      %s117 = sphi 0, %s101
    $region4: #{tpu_custom_call.1} parent=1 // loop_header_branch
      %20 = sbr.rel (%p18) target = $region8
    $region5: #{tpu_custom_call.1} parent=1 // loop_body
      %s22 = ssub.s32 %s17, 1
      %s23 = ssub.s32 %s17, 2
      %s30 = sadd.s32 1, %s25
      %p31 = scmp.ge.s32.totalorder %s30, 1
      %s32 = scalar_select %p31, 0, %s30
      %s33 = sadd.s32 1, %s24
      %s34 = scalar_select %p31, %s33, %s24
      %p35 = scmp.ge.s32.totalorder %s34, 2
      %s36 = scalar_select %p35, 0, %s34
      %s37 = ssub.s32 %s24, %s36
      %s38 = ssub.s32 %s25, %s32
      %s39 = sor.u32 %s37, %s38
      %p40 = scmp.eq.s32.totalorder %s39, 0
      %s42 = sadd.s32 %s41, 1
      %s43 = scalar_select %p40, %s41, %s42
      %p46 = pneg %p40
      %p47 = scmp.eq.s32.totalorder %s17, 1
      %p48 = por %p46, %p47
      %p49 = scmp.ne.s32.totalorder %s41, %s44
      %p50 = scmp.eq.s32.totalorder %s17, 0
      %p51 = por %p49, %p50
      %p52 = scmp.ne.s32.totalorder %s41, %s44
      %p53 = scmp.eq.s32.totalorder %s22, 1
      %p54 = por %p52, %p53
      %p55 = scmp.ne.s32.totalorder %s44, %s45
      %p56 = scmp.eq.s32.totalorder %s22, 0
      %p57 = por %p55, %p56
      %p58 = scmp.ne.s32.totalorder %s44, %s45
      %p59 = scmp.eq.s32.totalorder %s23, 1
      %p60 = por %p58, %p59
      %p62 = scmp.ne.s32.totalorder %s45, %s61
      %p63 = scmp.eq.s32.totalorder %s23, 0
      %p64 = por %p62, %p63
      %s65 = ssub.s32 %s24, %s36
      %s66 = ssub.s32 %s25, %s32
      %s67 = sor.u32 %s65, %s66
      %p68 = scmp.eq.s32.totalorder %s67, 0
      %s70 = sadd.s32 %s69, 1
      %s71 = scalar_select %p68, %s69, %s70
      %p74 = pneg %p68
      %p75 = scmp.eq.s32.totalorder %s17, 1
      %p76 = por %p74, %p75
      %p77 = scmp.ne.s32.totalorder %s69, %s72
      %p78 = scmp.eq.s32.totalorder %s17, 0
      %p79 = por %p77, %p78
      %p80 = scmp.ne.s32.totalorder %s69, %s72
      %p81 = scmp.eq.s32.totalorder %s22, 1
      %p82 = por %p80, %p81
      %p83 = scmp.ne.s32.totalorder %s72, %s73
      %p84 = scmp.eq.s32.totalorder %s22, 0
      %p85 = por %p83, %p84
      %p86 = scmp.ne.s32.totalorder %s72, %s73
      %p87 = scmp.eq.s32.totalorder %s23, 1
      %p88 = por %p86, %p87
      %p90 = scmp.ne.s32.totalorder %s73, %s89
      %p91 = scmp.eq.s32.totalorder %s23, 0
      %p92 = por %p90, %p91
      %s93 = ssub.s32 %s24, %s36
      %s94 = ssub.s32 %s25, %s32
      %s95 = sor.u32 %s93, %s94
      %p96 = scmp.eq.s32.totalorder %s95, 0
      %s98 = sadd.s32 %s97, 1
      %s99 = scalar_select %p96, %s97, %s98
      %p102 = pneg %p96
      %p103 = scmp.eq.s32.totalorder %s17, 1
      %p104 = por %p102, %p103
      %p105 = scmp.ne.s32.totalorder %s97, %s100
      %p106 = scmp.eq.s32.totalorder %s17, 0
      %p107 = por %p105, %p106
      %p108 = scmp.ne.s32.totalorder %s97, %s100
      %p109 = scmp.eq.s32.totalorder %s22, 1
      %p110 = por %p108, %p109
      %p111 = scmp.ne.s32.totalorder %s100, %s101
      %p112 = scmp.eq.s32.totalorder %s22, 0
      %p113 = por %p111, %p112
      %p114 = scmp.ne.s32.totalorder %s100, %s101
      %p115 = scmp.eq.s32.totalorder %s23, 1
      %p116 = por %p114, %p115
      %p118 = scmp.ne.s32.totalorder %s101, %s117
      %p119 = scmp.eq.s32.totalorder %s23, 0
      %p120 = por %p118, %p119
      %p121 = scmp.le.s32.totalorder 1, %s17
      %p122 = scmp.lt.s32.totalorder %s17, 3
      %p123 = pnand %p121, %p122
      %p124 = pneg %p123
      // Predicated region
      $region9: #{tpu_custom_call.1} parent=5 // pred_check
        _
      $region10: #{tpu_custom_call.1} parent=5 // pred_check_branch
        %126 = sbr.rel (%p123) target = $region12
      $region11: #{tpu_custom_call.1} parent=5 // pred_region
        %s127 = ssub.s32 %s17, 1
      $region12: #{tpu_custom_call.1} parent=5 // pred_fallthru
        _
      %p128 = scmp.lt.s32.totalorder %s17, 2
      // Predicated region
      $region13: #{tpu_custom_call.1} parent=5 // pred_check
        %p129 = pneg %p128
      $region14: #{tpu_custom_call.1} parent=5 // pred_check_branch
        %131 = sbr.rel (%p129) target = $region16
      $region15: #{tpu_custom_call.1} parent=5 // pred_region
        // Predicated region
        $region17: #{tpu_custom_call.1} parent=15 // pred_check
          %p132 = pneg %p51
        $region18: #{tpu_custom_call.1} parent=15 // pred_check_branch
          %134 = sbr.rel (%p132) target = $region20
        $region19: #{tpu_custom_call.1} parent=15 // pred_region
          %s135 = sand.u32 %s41, 1
          %s136 = scalar_lea.sflag [#allocation3], %s135
          %s137 = sand.u32 %s41, 1
          %s138 = smul.addr %s137, 8
          %s139 = scalar_lea.vmem [#allocation2], %s138
          %s141 = ssub.s32 128, 128
          %142 = vsyncadd %s136, %s141
          %s143 = smul.addr %s24, 4
          %s144 = sadd.s32 %s25, %s143
          %s145 = smul.addr %s144, 32
          %s146 = scalar_lea.hbm %s0, %s145
          %s147 = sshll.u32 %s139, 4
          %s148 = int_to_ptr.vmem [resolvable:$true] %s147
          %153 = dma.hbm_to_vmem [thread:$0]  %s146, 128, %s148, %s136, 32, 32, 2
        $region20: #{tpu_custom_call.1} parent=15 // pred_fallthru
          _
        // Predicated region
        $region21: #{tpu_custom_call.1} parent=15 // pred_check
          %p154 = pneg %p79
        $region22: #{tpu_custom_call.1} parent=15 // pred_check_branch
          %156 = sbr.rel (%p154) target = $region24
        $region23: #{tpu_custom_call.1} parent=15 // pred_region
          %s157 = sand.u32 %s69, 1
          %s158 = scalar_lea.sflag [#allocation6], %s157
          %s159 = sand.u32 %s69, 1
          %s160 = smul.addr %s159, 6
          %s161 = scalar_lea.vmem [#allocation5], %s160
          %s163 = ssub.s32 96, 96
          %164 = vsyncadd %s158, %s163
          %s165 = smul.addr %s24, 3
          %s166 = sadd.s32 %s25, %s165
          %s167 = smul.addr %s166, 32
          %s168 = scalar_lea.hbm %s1, %s167
          %s169 = sshll.u32 %s161, 4
          %s170 = int_to_ptr.vmem [resolvable:$true] %s169
          %175 = dma.hbm_to_vmem [thread:$0]  %s168, 96, %s170, %s158, 32, 32, 2
        $region24: #{tpu_custom_call.1} parent=15 // pred_fallthru
          _
      $region16: #{tpu_custom_call.1} parent=5 // pred_fallthru
        _
      %p176 = scmp.le.s32.totalorder 1, %s17
      %p177 = scmp.lt.s32.totalorder %s17, 3
      %p178 = pnand %p176, %p177
      %p179 = pneg %p178
      // Predicated region
      $region25: #{tpu_custom_call.1} parent=5 // pred_check
        _
      $region26: #{tpu_custom_call.1} parent=5 // pred_check_branch
        %181 = sbr.rel (%p178) target = $region28
      $region27: #{tpu_custom_call.1} parent=5 // pred_region
        %s182 = ssub.s32 %s17, 1
        %s183 = sand.u32 %s44, 1
        %s184 = scalar_lea.sflag [#allocation3], %s183
        %s185 = sand.u32 %s44, 1
        %s186 = smul.addr %s185, 8
        %s187 = scalar_lea.vmem [#allocation2], %s186
        // Predicated region
        $region29: #{tpu_custom_call.1} parent=27 // pred_check
          %p188 = pneg %p57
        $region30: #{tpu_custom_call.1} parent=27 // pred_check_branch
          %190 = sbr.rel (%p188) target = $region32
        $region31: #{tpu_custom_call.1} parent=27 // pred_region
          %191 = dma.done %s184, 128
        $region32: #{tpu_custom_call.1} parent=27 // pred_fallthru
          _
        %s192 = sand.u32 %s72, 1
        %s193 = scalar_lea.sflag [#allocation6], %s192
        %s194 = sand.u32 %s72, 1
        %s195 = smul.addr %s194, 6
        %s196 = scalar_lea.vmem [#allocation5], %s195
        // Predicated region
        $region33: #{tpu_custom_call.1} parent=27 // pred_check
          %p197 = pneg %p85
        $region34: #{tpu_custom_call.1} parent=27 // pred_check_branch
          %199 = sbr.rel (%p197) target = $region36
        $region35: #{tpu_custom_call.1} parent=27 // pred_region
          %200 = dma.done %s193, 96
        $region36: #{tpu_custom_call.1} parent=27 // pred_fallthru
          _
        %s201 = sand.u32 %s44, 1
        %s202 = scalar_lea.sflag [#allocation3], %s201
        %s203 = sand.u32 %s44, 1
        %s204 = smul.addr %s203, 8
        %s205 = scalar_lea.vmem [#allocation2], %s204
        %p206 = pneg %p57
        %p207 = pneg %p54
        %s208 = sand.u32 %s72, 1
        %s209 = scalar_lea.sflag [#allocation6], %s208
        %s210 = sand.u32 %s72, 1
        %s211 = smul.addr %s210, 6
        %s212 = scalar_lea.vmem [#allocation5], %s211
        %p213 = pneg %p85
        %p214 = pneg %p82
        %p215 = pneg %p113
        %p216 = pneg %p110
        %s217 = sand.u32 %s100, 1
        %s218 = scalar_lea.sflag [#allocation4], %s217
        %s219 = sand.u32 %s100, 1
        %s220 = scalar_lea.vmem [#allocation7], %s219
        %v221 = vld [vmem:[%s187] sm:$0x3]
        %v222 = vld [vmem:[%s187 + $0x2] sm:$0x3]
        %v223 = vld [vmem:[%s187 + $0x4] sm:$0x3]
        %v224 = vld [vmem:[%s187 + $0x6] sm:$0x3]
        %vm225 = vcmask 1041408
        %v226 = vsel %vm225, %v221, -inf
        %v227 = vsel %vm225, %v222, -inf
        %v228 = vsel %vm225, %v223, -inf
        %v229 = vsel %vm225, %v224, -inf
        %v230 = vmax.f32 %v226, %v227
        %v231 = vmax.f32 %v228, %v229
        %v232 = vmax.f32 %v230, %v231
        %v233 = vsub.f32 %v221, %v232
        %v234 = vsub.f32 %v222, %v232
        %v235 = vsub.f32 %v223, %v232
        %v236 = vsub.f32 %v224, %v232
        %v237 = vmul.f32 %v233, 1.442695
        %v238 = vpow.pop %v237
        %v239 = vmul.f32 %v234, 1.442695
        %v240 = vpow.pop %v239
        %v241 = vmul.f32 %v235, 1.442695
        %v242 = vpow.pop %v241
        %v243 = vmul.f32 %v236, 1.442695
        %v244 = vpow.pop %v243
        %v245 = vsel %vm225, %v238, 0.0
        %v246 = vsel %vm225, %v240, 0.0
        %v247 = vadd.f32 %v245, %v246
        %v248 = vsel %vm225, %v242, 0.0
        %v249 = vadd.f32 %v247, %v248
        %v250 = vsel %vm225, %v244, 0.0
        %v251 = vadd.f32 %v249, %v250
        %v252 = vrcp.pop %v251
        %v253 = vmul.f32 %v240, %v252
        %v254 = vmul.f32 %v242, %v252
        %v255 = vmul.f32 %v244, %v252
        %v256 = vld [vmem:[%s196] sm:$0x3]
        %v257 = vld [vmem:[%s196 + $0x2] sm:$0x3]
        %v258 = vld [vmem:[%s196 + $0x4] sm:$0x3]
        %v259 = vmul.f32 %v253, %v256
        %v260 = vmul.f32 %v254, %v257
        %v261 = vmul.f32 %v255, %v258
        %v262 = vsel %vm225, %v259, 0.0
        %v263 = vsel %vm225, %v260, 0.0
        %v264 = vadd.f32 %v262, %v263
        %v265 = vsel %vm225, %v261, 0.0
        %v266 = vadd.f32 %v264, %v265
        %267 = vadd.xlane.f32.xlu0 %v266
        %v268 = vpop.xlane.xlu0 %267
        %v269 = vrot.slane %v268, 4
        %v270 = vadd.f32 %v268, %v269
        %v271 = vrot.slane %v270, 2
        %v272 = vadd.f32 %v270, %v271
        %v273 = vrot.slane %v272, 1
        %v274 = vadd.f32 %v272, %v273
        %s275 = vtos %v274
        %v276 = vstv %s275
        %v277 = vadd.f32 %v276, 0.0
        %278 = vst [vmem:[%s220] sm:$0x1] %v277
        %s279 = sand.u32 %s100, 1
        %s280 = scalar_lea.sflag [#allocation4], %s279
        %s281 = sand.u32 %s100, 1
        %s282 = scalar_lea.vmem [#allocation7], %s281
        // Predicated region
        $region37: #{tpu_custom_call.1} parent=27 // pred_check
          %p283 = pneg %p110
        $region38: #{tpu_custom_call.1} parent=27 // pred_check_branch
          %285 = sbr.rel (%p283) target = $region40
        $region39: #{tpu_custom_call.1} parent=27 // pred_region
          %s287 = ssub.s32 16, 16
          %288 = vsyncadd %s280, %s287
          %s289 = sadd.s32 %s27, %s26
          %s290 = smul.addr %s289, 16
          %s291 = scalar_lea.hbm %s2, %s290
          %s293 = sshll.u32 %s282, 4
          %s294 = int_to_ptr.vmem [resolvable:$true] %s293
          %296 = dma.vmem_to_hbm [thread:$0]  %s294, 16, %s291, %s280
        $region40: #{tpu_custom_call.1} parent=27 // pred_fallthru
          _
      $region28: #{tpu_custom_call.1} parent=5 // pred_fallthru
        _
      %p297 = scmp.le.s32.totalorder 2, %s17
      // Predicated region
      $region41: #{tpu_custom_call.1} parent=5 // pred_check
        %p298 = pneg %p297
      $region42: #{tpu_custom_call.1} parent=5 // pred_check_branch
        %300 = sbr.rel (%p298) target = $region44
      $region43: #{tpu_custom_call.1} parent=5 // pred_region
        %s301 = ssub.s32 %s17, 2
        // Predicated region
        $region45: #{tpu_custom_call.1} parent=43 // pred_check
          %p302 = pneg %p116
        $region46: #{tpu_custom_call.1} parent=43 // pred_check_branch
          %304 = sbr.rel (%p302) target = $region48
        $region47: #{tpu_custom_call.1} parent=43 // pred_region
          %s305 = sand.u32 %s101, 1
          %s306 = scalar_lea.sflag [#allocation4], %s305
          %s307 = sand.u32 %s101, 1
          %s308 = scalar_lea.vmem [#allocation7], %s307
          %309 = dma.done %s306, 16
        $region48: #{tpu_custom_call.1} parent=43 // pred_fallthru
          _
      $region44: #{tpu_custom_call.1} parent=5 // pred_fallthru
        _
    $region6: #{tpu_custom_call.1} parent=1 // loop_footer
      %s21 = sadd.s32 1, %s17
    $region7: #{tpu_custom_call.1} parent=1 // loop_footer_branch
      %16 = sbr.rel target = $region3
    $region8: #{tpu_custom_call.1} parent=1 // loop_exit
      _
    %310 = vsyncpa [#allocation3], 1
    %s311 = scalar_lea.sflag [#allocation3], 1
    %312 = vsyncpa %s311, 1
    %313 = vsyncpa [#allocation6], 1
    %s314 = scalar_lea.sflag [#allocation6], 1
    %315 = vsyncpa %s314, 1
    %316 = vsyncpa [#allocation4], 1
    %s317 = scalar_lea.sflag [#allocation4], 1
    %318 = vsyncpa %s317, 1

</llo_original>
